<compile_context>
chip_gen: v5e
topology: v5e:2x2
jax: 0.10.0
libtpu: 0.0.40
codegen_flags: <defaults>
</compile_context>

<pallas_src>
import jax
import jax.numpy as jnp
from jax.experimental import pallas as pl
from jax.experimental.pallas import tpu as pltpu


def fourier_features_kernel(x_ref, b_ref, o_ref):
    """Compute 2*pi * x @ B via VPU broadcast-FMAs, write [sin | cos].

    x_ref: (tm, K)            VMEM
    b_ref: (K, num_freq)      VMEM (whole B, resident across the grid)
    o_ref: (tm, 2*num_freq)   VMEM
    """
    k_dim = b_ref.shape[0]
    num_freq = b_ref.shape[1]

    # Fold the 2*pi scale into the small B tile (K x num_freq), not the big proj.
    b = b_ref[...].astype(jnp.float32) * (2.0 * jnp.pi)
    x = x_ref[...].astype(jnp.float32)

    # K is tiny and static -> unrolled broadcast-FMA chain on the VPU
    # (avoids a near-empty MXU matmul becoming the binding slot).
    proj = x[:, 0:1] * b[0:1, :]
    for k in range(1, k_dim):
        proj = proj + x[:, k:k + 1] * b[k:k + 1, :]

    # Lane-aligned half-tile stores (num_freq is a multiple of 128 by default).
    o_ref[:, :num_freq] = jnp.sin(proj).astype(o_ref.dtype)
    o_ref[:, num_freq:] = jnp.cos(proj).astype(o_ref.dtype)


def fourier_features(
    x: jax.Array,
    B: jax.Array,
    *,
    tile_m: int = 1024,
    out_dtype=jnp.float32,
) -> jax.Array:
    """Apply Fourier feature mapping along the last axis of x.

    x: (..., in_features) float32
    B: (in_features, num_frequencies) float32
    returns: (..., 2*num_frequencies) in `out_dtype` (default f32, matching
             the PyTorch reference; pass bf16 only if the consumer tolerates it).
    """
    in_features, num_freq = B.shape
    assert x.shape[-1] == in_features

    leading = x.shape[:-1]
    M = 1
    for d in leading:
        M *= d
    x2d = x.reshape(M, in_features)

    # Row tile: whole M if small (full-dim block is always legal), otherwise a
    # large multiple-of-8 tile; pad M with zero rows so the grid divides evenly.
    if M <= tile_m:
        tm = M
        m_pad = M
    else:
        tm = tile_m
        m_pad = pl.cdiv(M, tm) * tm
        if m_pad != M:
            x2d = jnp.pad(x2d, ((0, m_pad - M), (0, 0)))

    grid = (m_pad // tm,)

    cost = pl.CostEstimate(
        flops=2 * m_pad * in_features * num_freq,
        transcendentals=2 * m_pad * num_freq,
        bytes_accessed=(
            m_pad * in_features * 4
            + in_features * num_freq * 4
            + m_pad * 2 * num_freq * jnp.dtype(out_dtype).itemsize
        ),
    )

    out2d = pl.pallas_call(
        fourier_features_kernel,
        out_shape=jax.ShapeDtypeStruct((m_pad, 2 * num_freq), out_dtype),
        grid_spec=pltpu.PrefetchScalarGridSpec(
            num_scalar_prefetch=0,
            grid=grid,
            in_specs=[
                pl.BlockSpec((tm, in_features), lambda i: (i, 0)),
                pl.BlockSpec((in_features, num_freq), lambda i: (0, 0)),
            ],
            out_specs=pl.BlockSpec((tm, 2 * num_freq), lambda i: (i, 0)),
        ),
        compiler_params=pltpu.CompilerParams(
            dimension_semantics=("parallel",),
        ),
        cost_estimate=cost,
    )(x2d, B)

    if m_pad != M:
        out2d = out2d[:M]
    return out2d.reshape(*leading, 2 * num_freq)


if __name__ == "__main__":
    # Module config (matches FourierFeatures defaults).
    in_features = 4
    num_frequencies = 128
    scale = 10.0

    # Deterministic parameter init (B buffer) and input.
    key = jax.random.PRNGKey(0)
    k_b, k_x = jax.random.split(key)
    B = jax.random.normal(k_b, (in_features, num_frequencies), dtype=jnp.float32) * scale

    # Small input consistent with the forward: (batch, seq, in_features).
    batch, seq = 2, 8
    x = jax.random.normal(k_x, (batch, seq, in_features), dtype=jnp.float32)

    out = fourier_features(x, B)
    out = jax.block_until_ready(out)

    # Sanity check against plain-JAX reference (same math as the PyTorch module).
    proj_ref = 2.0 * jnp.pi * (x @ B)
    ref = jnp.concatenate([jnp.sin(proj_ref), jnp.cos(proj_ref)], axis=-1)
    assert out.shape == (batch, seq, 2 * num_frequencies)
    assert jnp.allclose(out, ref, atol=1e-4, rtol=1e-4)

    print("KERNEL_OK")
</pallas_src>

<mosaic_0001>
module attributes {stable_mosaic.version = 11 : i64} {
  func.func @fourier_features_kernel(%arg0: i32, %arg1: memref<16x4xf32, #tpu.memory_space<vmem>>, %arg2: memref<4x128xf32, #tpu.memory_space<vmem>>, %arg3: memref<16x256xf32, #tpu.memory_space<vmem>>) attributes {dimension_semantics = [#tpu.dimension_semantics<parallel>], iteration_bounds = array<i64: 1>, scalar_prefetch = 0 : i64, scratch_operands = 0 : i64, tpu.core_type = #tpu.core_type<tc>, window_params = [{transform_indices = @transform_0, window_bounds = array<i64: 16, 4>}, {pipeline_mode = #tpu.pipeline_mode<synchronous>, transform_indices = @transform_1, window_bounds = array<i64: 4, 128>}, {transform_indices = @transform_2, window_bounds = array<i64: 16, 256>}]} {
    %c0 = arith.constant 0 : index
    %c0_0 = arith.constant 0 : index
    %0 = vector.load %arg2[%c0, %c0_0] : memref<4x128xf32, #tpu.memory_space<vmem>>, vector<4x128xf32>
    %cst = arith.constant 6.28318548 : f32
    %1 = vector.broadcast %cst : f32 to vector<4x128xf32>
    %2 = arith.mulf %0, %1 : vector<4x128xf32>
    %c0_1 = arith.constant 0 : index
    %c0_2 = arith.constant 0 : index
    %3 = vector.load %arg1[%c0_1, %c0_2] : memref<16x4xf32, #tpu.memory_space<vmem>>, vector<16x4xf32>
    %4 = vector.extract_strided_slice %3 {offsets = [0, 0], sizes = [16, 1], strides = [1, 1]} : vector<16x4xf32> to vector<16x1xf32>
    %5 = vector.extract_strided_slice %2 {offsets = [0, 0], sizes = [1, 128], strides = [1, 1]} : vector<4x128xf32> to vector<1x128xf32>
    %6 = vector.broadcast %4 : vector<16x1xf32> to vector<16x128xf32>
    %7 = vector.broadcast %5 : vector<1x128xf32> to vector<16x128xf32>
    %8 = arith.mulf %6, %7 : vector<16x128xf32>
    %9 = vector.extract_strided_slice %3 {offsets = [0, 1], sizes = [16, 1], strides = [1, 1]} : vector<16x4xf32> to vector<16x1xf32>
    %10 = vector.extract_strided_slice %2 {offsets = [1, 0], sizes = [1, 128], strides = [1, 1]} : vector<4x128xf32> to vector<1x128xf32>
    %11 = vector.broadcast %9 : vector<16x1xf32> to vector<16x128xf32>
    %12 = vector.broadcast %10 : vector<1x128xf32> to vector<16x128xf32>
    %13 = arith.mulf %11, %12 : vector<16x128xf32>
    %14 = arith.addf %8, %13 : vector<16x128xf32>
    %15 = vector.extract_strided_slice %3 {offsets = [0, 2], sizes = [16, 1], strides = [1, 1]} : vector<16x4xf32> to vector<16x1xf32>
    %16 = vector.extract_strided_slice %2 {offsets = [2, 0], sizes = [1, 128], strides = [1, 1]} : vector<4x128xf32> to vector<1x128xf32>
    %17 = vector.broadcast %15 : vector<16x1xf32> to vector<16x128xf32>
    %18 = vector.broadcast %16 : vector<1x128xf32> to vector<16x128xf32>
    %19 = arith.mulf %17, %18 : vector<16x128xf32>
    %20 = arith.addf %14, %19 : vector<16x128xf32>
    %21 = vector.extract_strided_slice %3 {offsets = [0, 3], sizes = [16, 1], strides = [1, 1]} : vector<16x4xf32> to vector<16x1xf32>
    %22 = vector.extract_strided_slice %2 {offsets = [3, 0], sizes = [1, 128], strides = [1, 1]} : vector<4x128xf32> to vector<1x128xf32>
    %23 = vector.broadcast %21 : vector<16x1xf32> to vector<16x128xf32>
    %24 = vector.broadcast %22 : vector<1x128xf32> to vector<16x128xf32>
    %25 = arith.mulf %23, %24 : vector<16x128xf32>
    %26 = arith.addf %20, %25 : vector<16x128xf32>
    %27 = math.sin %26 : vector<16x128xf32>
    %c0_3 = arith.constant 0 : index
    %c0_4 = arith.constant 0 : index
    %28 = vector.load %arg3[%c0_3, %c0_4] : memref<16x256xf32, #tpu.memory_space<vmem>>, vector<16x128xf32>
    tpu.vector_store %arg3[%c0_3, %c0_4], %27 {strides = array<i32>} : memref<16x256xf32, #tpu.memory_space<vmem>>, vector<16x128xf32>,
    %29 = math.cos %26 : vector<16x128xf32>
    %c0_5 = arith.constant 0 : index
    %c128 = arith.constant 128 : index
    %30 = vector.load %arg3[%c0_5, %c128] : memref<16x256xf32, #tpu.memory_space<vmem>>, vector<16x128xf32>
    tpu.vector_store %arg3[%c0_5, %c128], %29 {strides = array<i32>} : memref<16x256xf32, #tpu.memory_space<vmem>>, vector<16x128xf32>,
    return
  }
  func.func @transform_0(%arg0: i32) -> (i32, i32) {
    %c0_i32 = arith.constant 0 : i32
    %c0_i32_0 = arith.constant 0 : i32
    return %arg0, %c0_i32 : i32, i32
  }
  func.func @transform_1(%arg0: i32) -> (i32, i32) {
    %c0_i32 = arith.constant 0 : i32
    %c0_i32_0 = arith.constant 0 : i32
    %c0_i32_1 = arith.constant 0 : i32
    return %c0_i32, %c0_i32_0 : i32, i32
  }
  func.func @transform_2(%arg0: i32) -> (i32, i32) {
    %c0_i32 = arith.constant 0 : i32
    %c0_i32_0 = arith.constant 0 : i32
    return %arg0, %c0_i32 : i32, i32
  }
}

</mosaic_0001>

<llo_original>
// kernel: tpu_custom_call.1
$region0: #{tpu_custom_call.1}
  #allocation0 [shape = 'u32[]', space=smem, size = 0x4, offset = 0x4, fixed_abs, tag = 'smem constant byte address 0x4 - core index']
  #allocation1 [shape = 'u32[72,128]{1,0:T(1,128)}', space=vmem, size = 0x9000, scoped, tag = 'internal scratch']
  %s0 = inlined_call_operand.vmem [shape: f32[16,4], index: 0, kind: input, shape index: {}]
  %s1 = inlined_call_operand.vmem [shape: f32[4,128], index: 1, kind: input, shape index: {}]
  %s2 = inlined_call_operand.hbm [shape: f32[16,256], index: 2, kind: output, shape index: {}]
  %s3 = sld [smem:[#allocation0]]
  $region18: #{tpu_custom_call.1} parent=0
    _
  %s5 = ssub.s32 1, %s3
  %s6 = scalar_select 0, %s5, %s3
  $region1: #{tpu_custom_call.1} parent=0
    #allocation2 [shape = 'u8[16384]{0}', space=vmem, size = 0x4000, scoped, tag = 'output window, operand 0, single buffered']
    #allocation3 [shape = 's32[1]{0}', space=sflag, size = 0x4, scoped, tag = 'scoped memory for tpu_custom_call.1']
    %7 = vsyncpa [#allocation3], 0
    // Predicated region
    $region2: #{tpu_custom_call.1} parent=1 // pred_check
      _
    $region3: #{tpu_custom_call.1} parent=1 // pred_check_branch
      %9 = sbr.rel (0) target = $region5
    $region4: #{tpu_custom_call.1} parent=1 // pred_region
      _
    $region5: #{tpu_custom_call.1} parent=1 // pred_fallthru
      _
    // Predicated region
    $region6: #{tpu_custom_call.1} parent=1 // pred_check
      _
    $region7: #{tpu_custom_call.1} parent=1 // pred_check_branch
      %11 = sbr.rel (0) target = $region9
    $region8: #{tpu_custom_call.1} parent=1 // pred_region
      _
    $region9: #{tpu_custom_call.1} parent=1 // pred_fallthru
      _
    %v12 = vld [vmem:[%s1] sm:$0xf]
    %v13 = vmul.f32 %v12, 6.2831855
    %v14 = vld [vmem:[%s0] sm:$0xff]
    %v15 = vld [vmem:[%s0 + $0x8] sm:$0xff]
    %17 = vset.pattern.permute.xlu0 0
    %18 = vperm.xlu0 %17, %v14
    %v19 = vpop.permute.xlu0 %18
    %22 = vset.pattern.permute.xlu0 0
    %23 = vperm.xlu0 %22, %v15
    %v24 = vpop.permute.xlu0 %23
    %v26 = vperm.slane %v13, 0
    %v27 = vmul.f32 %v19, %v26
    %v28 = vmul.f32 %v24, %v26
    %29 = vset.pattern.permute.xlu0 1
    %30 = vperm.xlu0 %29, %v14
    %v31 = vpop.permute.xlu0 %30
    %33 = vset.pattern.permute.xlu0 1
    %34 = vperm.xlu0 %33, %v15
    %v35 = vpop.permute.xlu0 %34
    %v37 = vperm.slane %v13, 1
    %v38 = vmul.f32 %v31, %v37
    %v39 = vmul.f32 %v35, %v37
    %v40 = vadd.f32 %v27, %v38
    %v41 = vadd.f32 %v28, %v39
    %42 = vset.pattern.permute.xlu0 2
    %43 = vperm.xlu0 %42, %v14
    %v44 = vpop.permute.xlu0 %43
    %46 = vset.pattern.permute.xlu0 2
    %47 = vperm.xlu0 %46, %v15
    %v48 = vpop.permute.xlu0 %47
    %v50 = vperm.slane %v13, 2
    %v51 = vmul.f32 %v44, %v50
    %v52 = vmul.f32 %v48, %v50
    %v53 = vadd.f32 %v40, %v51
    %v54 = vadd.f32 %v41, %v52
    %55 = vset.pattern.permute.xlu0 3
    %56 = vperm.xlu0 %55, %v14
    %v57 = vpop.permute.xlu0 %56
    %59 = vset.pattern.permute.xlu0 3
    %60 = vperm.xlu0 %59, %v15
    %v61 = vpop.permute.xlu0 %60
    %v63 = vperm.slane %v13, 3
    %v64 = vmul.f32 %v57, %v63
    %v65 = vmul.f32 %v61, %v63
    %v66 = vadd.f32 %v53, %v64
    %v67 = vadd.f32 %v54, %v65
    %v68 = vand.u32 2147483647, %v66
    %vm69 = vcmp.le.f32.partialorder %v68, 0.7853982
    %vm70 = vcmp.lt.s32.totalorder %v66, 0
    %v71 = vand.u32 %v66, 2139095040
    %v72 = vshrl.u32 %v71, 23
    %v73 = vsub.s32 %v72, 127
    %v74 = vand.u32 2147483647, %v66
    %v75 = vand.u32 %v74, 8388607
    %v76 = vor.u32 %v75, 8388608
    %v77 = vsub.s32 0, %v76
    %v78 = vadd.s32 %v73, 1
    %vm79 = vcmp.gt.s32.totalorder %v78, 0
    %v80 = vsel %vm79, %v78, 0
    %v81 = vshrl.u32 %v80, 5
    %v82 = vand.u32 %v80, 31
    %v83 = vsub.s32 32, %v82
    %v84 = vshrl.u32 683565275, %v83
    %v85 = vshll.u32 683565275, %v82
    %v86 = vshrl.u32 2475754826, %v83
    %v87 = vor.u32 %v85, %v86
    %v88 = vshll.u32 2475754826, %v82
    %v89 = vshrl.u32 2131351028, %v83
    %v90 = vor.u32 %v88, %v89
    %v91 = vshll.u32 2131351028, %v82
    %v92 = vshrl.u32 2102212464, %v83
    %v93 = vor.u32 %v91, %v92
    %v94 = vshll.u32 2102212464, %v82
    %v95 = vshrl.u32 920167782, %v83
    %v96 = vor.u32 %v94, %v95
    %v97 = vshll.u32 920167782, %v82
    %v98 = vshrl.u32 1326507024, %v83
    %v99 = vor.u32 %v97, %v98
    %vm100 = vcmp.lt.s32.totalorder %v81, 1
    %vm101 = vcmp.lt.s32.totalorder %v81, 2
    %vm102 = vcmp.lt.s32.totalorder %v81, 3
    %vm103 = vcmp.lt.s32.totalorder %v81, 4
    %v104 = vsel %vm100, %v84, %v87
    %v105 = vsel %vm103, %v93, 2102212464
    %v106 = vsel %vm102, %v90, %v105
    %v107 = vsel %vm101, %v104, %v106
    %v108 = vsel %vm100, %v87, %v90
    %v109 = vsel %vm103, %v96, 920167782
    %v110 = vsel %vm102, %v93, %v109
    %v111 = vsel %vm101, %v108, %v110
    %v112 = vsel %vm100, %v90, %v93
    %v113 = vsel %vm103, %v99, 1326507024
    %v114 = vsel %vm102, %v96, %v113
    %v115 = vsel %vm101, %v112, %v114
    %v116 = vshll.u32 %v76, 8
    %v117 = vand.u32 %v116, 65535
    %v118 = vshrl.u32 %v116, 16
    %v119 = vand.u32 %v115, 65535
    %v120 = vshrl.u32 %v115, 16
    %v121 = vmul.u32 %v117, %v119
    %v122 = vmul.u32 %v117, %v120
    %v123 = vmul.u32 %v118, %v119
    %v124 = vmul.u32 %v118, %v120
    %v125 = vshll.u32 %v122, 16
    %v126 = vshrl.u32 %v122, 16
    %v127 = vshll.u32 %v123, 16
    %v128 = vshrl.u32 %v123, 16
    %vm129 = vc.u32 %v121, %v125
    %v130 = vsel %vm129, 1, 0
    %v131 = vadd.s32 %v121, %v125
    %v132 = vadd.s32 %v124, %v130
    %vm133 = vc.u32 %v131, %v127
    %v134 = vsel %vm133, 1, 0
    %v135 = vadd.s32 %v131, %v127
    %v136 = vadd.s32 %v132, %v134
    %v137 = vadd.s32 %v136, %v126
    %v138 = vadd.s32 %v137, %v128
    %v139 = vand.u32 %v116, 65535
    %v140 = vshrl.u32 %v116, 16
    %v141 = vand.u32 %v111, 65535
    %v142 = vshrl.u32 %v111, 16
    %v143 = vmul.u32 %v139, %v141
    %v144 = vmul.u32 %v139, %v142
    %v145 = vmul.u32 %v140, %v141
    %v146 = vmul.u32 %v140, %v142
    %v147 = vshll.u32 %v144, 16
    %v148 = vshrl.u32 %v144, 16
    %v149 = vshll.u32 %v145, 16
    %v150 = vshrl.u32 %v145, 16
    %vm151 = vc.u32 %v143, %v147
    %v152 = vsel %vm151, 1, 0
    %v153 = vadd.s32 %v143, %v147
    %v154 = vadd.s32 %v146, %v152
    %vm155 = vc.u32 %v153, %v149
    %v156 = vsel %vm155, 1, 0
    %v157 = vadd.s32 %v153, %v149
    %v158 = vadd.s32 %v154, %v156
    %v159 = vadd.s32 %v158, %v148
    %v160 = vadd.s32 %v159, %v150
    %v161 = vmul.u32 %v116, %v107
    %v162 = vadd.s32 %v138, %v157
    %vm163 = vc.u32 %v138, %v157
    %v164 = vadd.s32 %v160, 1
    %v165 = vsel %vm163, %v164, %v160
    %v166 = vadd.s32 %v161, %v165
    %v167 = vadd.s32 %v166, 536870912
    %v168 = vshrl.u32 %v167, 30
    %v169 = vshll.u32 %v168, 30
    %v170 = vsub.s32 %v166, %v169
    %vm171 = vcmp.lt.s32.totalorder %v170, 0
    %v172 = vsub.s32 0, %v170
    %v173 = vsel %vm171, %v172, %v170
    %v174 = vclz %v173
    %v175 = vsub.s32 %v174, 2
    %vm176 = vcmp.gt.s32.totalorder 0, %v175
    %v177 = vsel %vm176, 0, %v175
    %v178 = vsub.s32 32, %v177
    %v179 = vshll.u32 %v170, %v177
    %v180 = vshrl.u32 %v162, %v178
    %v181 = vor.u32 %v179, %v180
    %v182 = vsub.s32 4294967266, %v177
    %v183 = vadd.s32 %v182, 127
    %v184 = vshll.u32 %v183, 23
    %v185 = vor.u32 4788187, %v184
    %v186 = vand.u32 2147483647, %v185
    %v188 = vcvt.s32.f32 %v181
    %v189 = vmul.f32 %v188, %v186
    %v190 = vxor.u32 %v189, 2147483648
    %v191 = vsel %vm70, %v190, %v189
    %v192 = vsub.s32 4, %v168
    %v193 = vsel %vm70, %v192, %v168
    %v194 = vsel %vm69, %v66, %v191
    %v195 = vsel %vm69, 0, %v193
    %v196 = vmul.f32 %v194, %v194
    %v197 = vmul.f32 %v196, -0.001358992
    %v198 = vadd.f32 %v197, 0.041655596
    %v199 = vmul.f32 %v196, %v198
    %v200 = vadd.f32 %v199, -0.4999988
    %v201 = vmul.f32 %v196, %v200
    %v202 = vadd.f32 1.0, %v201
    %v203 = vmul.f32 %v194, %v194
    %v204 = vmul.f32 %v203, -0.00019511016
    %v205 = vadd.f32 %v204, 0.008332121
    %v206 = vmul.f32 %v203, %v205
    %v207 = vadd.f32 %v206, -0.16666654
    %v208 = vmul.f32 %v203, %v207
    %v209 = vadd.f32 %v208, 1.0
    %v210 = vmul.f32 %v209, %v194
    %vm211 = vweird.f32 %v66
    %v212 = vadd.s32 %v195, 3
    %v213 = vand.u32 %v212, 3
    %vm214 = vcmp.lt.s32.totalorder %v213, 2
    %vm215 = vcmp.eq.s32.totalorder %v213, 0
    %v216 = vxor.u32 %v210, 2147483648
    %v217 = vsel %vm215, %v202, %v216
    %vm218 = vcmp.eq.s32.totalorder %v213, 2
    %v219 = vxor.u32 %v202, 2147483648
    %v220 = vsel %vm218, %v219, %v210
    %v221 = vsel %vm214, %v217, %v220
    %v222 = vsel %vm211, nan, %v221
    %v223 = vand.u32 2147483647, %v67
    %vm224 = vcmp.le.f32.partialorder %v223, 0.7853982
    %vm225 = vcmp.lt.s32.totalorder %v67, 0
    %v226 = vand.u32 %v67, 2139095040
    %v227 = vshrl.u32 %v226, 23
    %v228 = vsub.s32 %v227, 127
    %v229 = vand.u32 2147483647, %v67
    %v230 = vand.u32 %v229, 8388607
    %v231 = vor.u32 %v230, 8388608
    %v232 = vsub.s32 0, %v231
    %v233 = vadd.s32 %v228, 1
    %vm234 = vcmp.gt.s32.totalorder %v233, 0
    %v235 = vsel %vm234, %v233, 0
    %v236 = vshrl.u32 %v235, 5
    %v237 = vand.u32 %v235, 31
    %v238 = vsub.s32 32, %v237
    %v239 = vshrl.u32 683565275, %v238
    %v240 = vshll.u32 683565275, %v237
    %v241 = vshrl.u32 2475754826, %v238
    %v242 = vor.u32 %v240, %v241
    %v243 = vshll.u32 2475754826, %v237
    %v244 = vshrl.u32 2131351028, %v238
    %v245 = vor.u32 %v243, %v244
    %v246 = vshll.u32 2131351028, %v237
    %v247 = vshrl.u32 2102212464, %v238
    %v248 = vor.u32 %v246, %v247
    %v249 = vshll.u32 2102212464, %v237
    %v250 = vshrl.u32 920167782, %v238
    %v251 = vor.u32 %v249, %v250
    %v252 = vshll.u32 920167782, %v237
    %v253 = vshrl.u32 1326507024, %v238
    %v254 = vor.u32 %v252, %v253
    %vm255 = vcmp.lt.s32.totalorder %v236, 1
    %vm256 = vcmp.lt.s32.totalorder %v236, 2
    %vm257 = vcmp.lt.s32.totalorder %v236, 3
    %vm258 = vcmp.lt.s32.totalorder %v236, 4
    %v259 = vsel %vm255, %v239, %v242
    %v260 = vsel %vm258, %v248, 2102212464
    %v261 = vsel %vm257, %v245, %v260
    %v262 = vsel %vm256, %v259, %v261
    %v263 = vsel %vm255, %v242, %v245
    %v264 = vsel %vm258, %v251, 920167782
    %v265 = vsel %vm257, %v248, %v264
    %v266 = vsel %vm256, %v263, %v265
    %v267 = vsel %vm255, %v245, %v248
    %v268 = vsel %vm258, %v254, 1326507024
    %v269 = vsel %vm257, %v251, %v268
    %v270 = vsel %vm256, %v267, %v269
    %v271 = vshll.u32 %v231, 8
    %v272 = vand.u32 %v271, 65535
    %v273 = vshrl.u32 %v271, 16
    %v274 = vand.u32 %v270, 65535
    %v275 = vshrl.u32 %v270, 16
    %v276 = vmul.u32 %v272, %v274
    %v277 = vmul.u32 %v272, %v275
    %v278 = vmul.u32 %v273, %v274
    %v279 = vmul.u32 %v273, %v275
    %v280 = vshll.u32 %v277, 16
    %v281 = vshrl.u32 %v277, 16
    %v282 = vshll.u32 %v278, 16
    %v283 = vshrl.u32 %v278, 16
    %vm284 = vc.u32 %v276, %v280
    %v285 = vsel %vm284, 1, 0
    %v286 = vadd.s32 %v276, %v280
    %v287 = vadd.s32 %v279, %v285
    %vm288 = vc.u32 %v286, %v282
    %v289 = vsel %vm288, 1, 0
    %v290 = vadd.s32 %v286, %v282
    %v291 = vadd.s32 %v287, %v289
    %v292 = vadd.s32 %v291, %v281
    %v293 = vadd.s32 %v292, %v283
    %v294 = vand.u32 %v271, 65535
    %v295 = vshrl.u32 %v271, 16
    %v296 = vand.u32 %v266, 65535
    %v297 = vshrl.u32 %v266, 16
    %v298 = vmul.u32 %v294, %v296
    %v299 = vmul.u32 %v294, %v297
    %v300 = vmul.u32 %v295, %v296
    %v301 = vmul.u32 %v295, %v297
    %v302 = vshll.u32 %v299, 16
    %v303 = vshrl.u32 %v299, 16
    %v304 = vshll.u32 %v300, 16
    %v305 = vshrl.u32 %v300, 16
    %vm306 = vc.u32 %v298, %v302
    %v307 = vsel %vm306, 1, 0
    %v308 = vadd.s32 %v298, %v302
    %v309 = vadd.s32 %v301, %v307
    %vm310 = vc.u32 %v308, %v304
    %v311 = vsel %vm310, 1, 0
    %v312 = vadd.s32 %v308, %v304
    %v313 = vadd.s32 %v309, %v311
    %v314 = vadd.s32 %v313, %v303
    %v315 = vadd.s32 %v314, %v305
    %v316 = vmul.u32 %v271, %v262
    %v317 = vadd.s32 %v293, %v312
    %vm318 = vc.u32 %v293, %v312
    %v319 = vadd.s32 %v315, 1
    %v320 = vsel %vm318, %v319, %v315
    %v321 = vadd.s32 %v316, %v320
    %v322 = vadd.s32 %v321, 536870912
    %v323 = vshrl.u32 %v322, 30
    %v324 = vshll.u32 %v323, 30
    %v325 = vsub.s32 %v321, %v324
    %vm326 = vcmp.lt.s32.totalorder %v325, 0
    %v327 = vsub.s32 0, %v325
    %v328 = vsel %vm326, %v327, %v325
    %v329 = vclz %v328
    %v330 = vsub.s32 %v329, 2
    %vm331 = vcmp.gt.s32.totalorder 0, %v330
    %v332 = vsel %vm331, 0, %v330
    %v333 = vsub.s32 32, %v332
    %v334 = vshll.u32 %v325, %v332
    %v335 = vshrl.u32 %v317, %v333
    %v336 = vor.u32 %v334, %v335
    %v337 = vsub.s32 4294967266, %v332
    %v338 = vadd.s32 %v337, 127
    %v339 = vshll.u32 %v338, 23
    %v340 = vor.u32 4788187, %v339
    %v341 = vand.u32 2147483647, %v340
    %v343 = vcvt.s32.f32 %v336
    %v344 = vmul.f32 %v343, %v341
    %v345 = vxor.u32 %v344, 2147483648
    %v346 = vsel %vm225, %v345, %v344
    %v347 = vsub.s32 4, %v323
    %v348 = vsel %vm225, %v347, %v323
    %v349 = vsel %vm224, %v67, %v346
    %v350 = vsel %vm224, 0, %v348
    %v351 = vmul.f32 %v349, %v349
    %v352 = vmul.f32 %v351, -0.001358992
    %v353 = vadd.f32 %v352, 0.041655596
    %v354 = vmul.f32 %v351, %v353
    %v355 = vadd.f32 %v354, -0.4999988
    %v356 = vmul.f32 %v351, %v355
    %v357 = vadd.f32 1.0, %v356
    %v358 = vmul.f32 %v349, %v349
    %v359 = vmul.f32 %v358, -0.00019511016
    %v360 = vadd.f32 %v359, 0.008332121
    %v361 = vmul.f32 %v358, %v360
    %v362 = vadd.f32 %v361, -0.16666654
    %v363 = vmul.f32 %v358, %v362
    %v364 = vadd.f32 %v363, 1.0
    %v365 = vmul.f32 %v364, %v349
    %vm366 = vweird.f32 %v67
    %v367 = vadd.s32 %v350, 3
    %v368 = vand.u32 %v367, 3
    %vm369 = vcmp.lt.s32.totalorder %v368, 2
    %vm370 = vcmp.eq.s32.totalorder %v368, 0
    %v371 = vxor.u32 %v365, 2147483648
    %v372 = vsel %vm370, %v357, %v371
    %vm373 = vcmp.eq.s32.totalorder %v368, 2
    %v374 = vxor.u32 %v357, 2147483648
    %v375 = vsel %vm373, %v374, %v365
    %v376 = vsel %vm369, %v372, %v375
    %v377 = vsel %vm366, nan, %v376
    %378 = vst [vmem:[#allocation2] sm:$0xff] %v222
    %379 = vst [vmem:[#allocation2 + $0x10] sm:$0xff] %v377
    %v380 = vand.u32 2147483647, %v66
    %vm381 = vcmp.le.f32.partialorder %v380, 0.7853982
    %vm382 = vcmp.lt.s32.totalorder %v66, 0
    %v383 = vand.u32 %v66, 2139095040
    %v384 = vshrl.u32 %v383, 23
    %v385 = vsub.s32 %v384, 127
    %v386 = vand.u32 2147483647, %v66
    %v387 = vand.u32 %v386, 8388607
    %v388 = vor.u32 %v387, 8388608
    %v389 = vsub.s32 0, %v388
    %v390 = vadd.s32 %v385, 1
    %vm391 = vcmp.gt.s32.totalorder %v390, 0
    %v392 = vsel %vm391, %v390, 0
    %v393 = vshrl.u32 %v392, 5
    %v394 = vand.u32 %v392, 31
    %v395 = vsub.s32 32, %v394
    %v396 = vshrl.u32 683565275, %v395
    %v397 = vshll.u32 683565275, %v394
    %v398 = vshrl.u32 2475754826, %v395
    %v399 = vor.u32 %v397, %v398
    %v400 = vshll.u32 2475754826, %v394
    %v401 = vshrl.u32 2131351028, %v395
    %v402 = vor.u32 %v400, %v401
    %v403 = vshll.u32 2131351028, %v394
    %v404 = vshrl.u32 2102212464, %v395
    %v405 = vor.u32 %v403, %v404
    %v406 = vshll.u32 2102212464, %v394
    %v407 = vshrl.u32 920167782, %v395
    %v408 = vor.u32 %v406, %v407
    %v409 = vshll.u32 920167782, %v394
    %v410 = vshrl.u32 1326507024, %v395
    %v411 = vor.u32 %v409, %v410
    %vm412 = vcmp.lt.s32.totalorder %v393, 1
    %vm413 = vcmp.lt.s32.totalorder %v393, 2
    %vm414 = vcmp.lt.s32.totalorder %v393, 3
    %vm415 = vcmp.lt.s32.totalorder %v393, 4
    %v416 = vsel %vm412, %v396, %v399
    %v417 = vsel %vm415, %v405, 2102212464
    %v418 = vsel %vm414, %v402, %v417
    %v419 = vsel %vm413, %v416, %v418
    %v420 = vsel %vm412, %v399, %v402
    %v421 = vsel %vm415, %v408, 920167782
    %v422 = vsel %vm414, %v405, %v421
    %v423 = vsel %vm413, %v420, %v422
    %v424 = vsel %vm412, %v402, %v405
    %v425 = vsel %vm415, %v411, 1326507024
    %v426 = vsel %vm414, %v408, %v425
    %v427 = vsel %vm413, %v424, %v426
    %v428 = vshll.u32 %v388, 8
    %v429 = vand.u32 %v428, 65535
    %v430 = vshrl.u32 %v428, 16
    %v431 = vand.u32 %v427, 65535
    %v432 = vshrl.u32 %v427, 16
    %v433 = vmul.u32 %v429, %v431
    %v434 = vmul.u32 %v429, %v432
    %v435 = vmul.u32 %v430, %v431
    %v436 = vmul.u32 %v430, %v432
    %v437 = vshll.u32 %v434, 16
    %v438 = vshrl.u32 %v434, 16
    %v439 = vshll.u32 %v435, 16
    %v440 = vshrl.u32 %v435, 16
    %vm441 = vc.u32 %v433, %v437
    %v442 = vsel %vm441, 1, 0
    %v443 = vadd.s32 %v433, %v437
    %v444 = vadd.s32 %v436, %v442
    %vm445 = vc.u32 %v443, %v439
    %v446 = vsel %vm445, 1, 0
    %v447 = vadd.s32 %v443, %v439
    %v448 = vadd.s32 %v444, %v446
    %v449 = vadd.s32 %v448, %v438
    %v450 = vadd.s32 %v449, %v440
    %v451 = vand.u32 %v428, 65535
    %v452 = vshrl.u32 %v428, 16
    %v453 = vand.u32 %v423, 65535
    %v454 = vshrl.u32 %v423, 16
    %v455 = vmul.u32 %v451, %v453
    %v456 = vmul.u32 %v451, %v454
    %v457 = vmul.u32 %v452, %v453
    %v458 = vmul.u32 %v452, %v454
    %v459 = vshll.u32 %v456, 16
    %v460 = vshrl.u32 %v456, 16
    %v461 = vshll.u32 %v457, 16
    %v462 = vshrl.u32 %v457, 16
    %vm463 = vc.u32 %v455, %v459
    %v464 = vsel %vm463, 1, 0
    %v465 = vadd.s32 %v455, %v459
    %v466 = vadd.s32 %v458, %v464
    %vm467 = vc.u32 %v465, %v461
    %v468 = vsel %vm467, 1, 0
    %v469 = vadd.s32 %v465, %v461
    %v470 = vadd.s32 %v466, %v468
    %v471 = vadd.s32 %v470, %v460
    %v472 = vadd.s32 %v471, %v462
    %v473 = vmul.u32 %v428, %v419
    %v474 = vadd.s32 %v450, %v469
    %vm475 = vc.u32 %v450, %v469
    %v476 = vadd.s32 %v472, 1
    %v477 = vsel %vm475, %v476, %v472
    %v478 = vadd.s32 %v473, %v477
    %v479 = vadd.s32 %v478, 536870912
    %v480 = vshrl.u32 %v479, 30
    %v481 = vshll.u32 %v480, 30
    %v482 = vsub.s32 %v478, %v481
    %vm483 = vcmp.lt.s32.totalorder %v482, 0
    %v484 = vsub.s32 0, %v482
    %v485 = vsel %vm483, %v484, %v482
    %v486 = vclz %v485
    %v487 = vsub.s32 %v486, 2
    %vm488 = vcmp.gt.s32.totalorder 0, %v487
    %v489 = vsel %vm488, 0, %v487
    %v490 = vsub.s32 32, %v489
    %v491 = vshll.u32 %v482, %v489
    %v492 = vshrl.u32 %v474, %v490
    %v493 = vor.u32 %v491, %v492
    %v494 = vsub.s32 4294967266, %v489
    %v495 = vadd.s32 %v494, 127
    %v496 = vshll.u32 %v495, 23
    %v497 = vor.u32 4788187, %v496
    %v498 = vand.u32 2147483647, %v497
    %v500 = vcvt.s32.f32 %v493
    %v501 = vmul.f32 %v500, %v498
    %v502 = vxor.u32 %v501, 2147483648
    %v503 = vsel %vm382, %v502, %v501
    %v504 = vsub.s32 4, %v480
    %v505 = vsel %vm382, %v504, %v480
    %v506 = vsel %vm381, %v66, %v503
    %v507 = vsel %vm381, 0, %v505
    %v508 = vmul.f32 %v506, %v506
    %v509 = vmul.f32 %v508, -0.001358992
    %v510 = vadd.f32 %v509, 0.041655596
    %v511 = vmul.f32 %v508, %v510
    %v512 = vadd.f32 %v511, -0.4999988
    %v513 = vmul.f32 %v508, %v512
    %v514 = vadd.f32 1.0, %v513
    %v515 = vmul.f32 %v506, %v506
    %v516 = vmul.f32 %v515, -0.00019511016
    %v517 = vadd.f32 %v516, 0.008332121
    %v518 = vmul.f32 %v515, %v517
    %v519 = vadd.f32 %v518, -0.16666654
    %v520 = vmul.f32 %v515, %v519
    %v521 = vadd.f32 %v520, 1.0
    %v522 = vmul.f32 %v521, %v506
    %vm523 = vweird.f32 %v66
    %v524 = vand.u32 %v507, 3
    %vm525 = vcmp.lt.s32.totalorder %v524, 2
    %vm526 = vcmp.eq.s32.totalorder %v524, 0
    %v527 = vxor.u32 %v522, 2147483648
    %v528 = vsel %vm526, %v514, %v527
    %vm529 = vcmp.eq.s32.totalorder %v524, 2
    %v530 = vxor.u32 %v514, 2147483648
    %v531 = vsel %vm529, %v530, %v522
    %v532 = vsel %vm525, %v528, %v531
    %v533 = vsel %vm523, nan, %v532
    %v534 = vand.u32 2147483647, %v67
    %vm535 = vcmp.le.f32.partialorder %v534, 0.7853982
    %vm536 = vcmp.lt.s32.totalorder %v67, 0
    %v537 = vand.u32 %v67, 2139095040
    %v538 = vshrl.u32 %v537, 23
    %v539 = vsub.s32 %v538, 127
    %v540 = vand.u32 2147483647, %v67
    %v541 = vand.u32 %v540, 8388607
    %v542 = vor.u32 %v541, 8388608
    %v543 = vsub.s32 0, %v542
    %v544 = vadd.s32 %v539, 1
    %vm545 = vcmp.gt.s32.totalorder %v544, 0
    %v546 = vsel %vm545, %v544, 0
    %v547 = vshrl.u32 %v546, 5
    %v548 = vand.u32 %v546, 31
    %v549 = vsub.s32 32, %v548
    %v550 = vshrl.u32 683565275, %v549
    %v551 = vshll.u32 683565275, %v548
    %v552 = vshrl.u32 2475754826, %v549
    %v553 = vor.u32 %v551, %v552
    %v554 = vshll.u32 2475754826, %v548
    %v555 = vshrl.u32 2131351028, %v549
    %v556 = vor.u32 %v554, %v555
    %v557 = vshll.u32 2131351028, %v548
    %v558 = vshrl.u32 2102212464, %v549
    %v559 = vor.u32 %v557, %v558
    %v560 = vshll.u32 2102212464, %v548
    %v561 = vshrl.u32 920167782, %v549
    %v562 = vor.u32 %v560, %v561
    %v563 = vshll.u32 920167782, %v548
    %v564 = vshrl.u32 1326507024, %v549
    %v565 = vor.u32 %v563, %v564
    %vm566 = vcmp.lt.s32.totalorder %v547, 1
    %vm567 = vcmp.lt.s32.totalorder %v547, 2
    %vm568 = vcmp.lt.s32.totalorder %v547, 3
    %vm569 = vcmp.lt.s32.totalorder %v547, 4
    %v570 = vsel %vm566, %v550, %v553
    %v571 = vsel %vm569, %v559, 2102212464
    %v572 = vsel %vm568, %v556, %v571
    %v573 = vsel %vm567, %v570, %v572
    %v574 = vsel %vm566, %v553, %v556
    %v575 = vsel %vm569, %v562, 920167782
    %v576 = vsel %vm568, %v559, %v575
    %v577 = vsel %vm567, %v574, %v576
    %v578 = vsel %vm566, %v556, %v559
    %v579 = vsel %vm569, %v565, 1326507024
    %v580 = vsel %vm568, %v562, %v579
    %v581 = vsel %vm567, %v578, %v580
    %v582 = vshll.u32 %v542, 8
    %v583 = vand.u32 %v582, 65535
    %v584 = vshrl.u32 %v582, 16
    %v585 = vand.u32 %v581, 65535
    %v586 = vshrl.u32 %v581, 16
    %v587 = vmul.u32 %v583, %v585
    %v588 = vmul.u32 %v583, %v586
    %v589 = vmul.u32 %v584, %v585
    %v590 = vmul.u32 %v584, %v586
    %v591 = vshll.u32 %v588, 16
    %v592 = vshrl.u32 %v588, 16
    %v593 = vshll.u32 %v589, 16
    %v594 = vshrl.u32 %v589, 16
    %vm595 = vc.u32 %v587, %v591
    %v596 = vsel %vm595, 1, 0
    %v597 = vadd.s32 %v587, %v591
    %v598 = vadd.s32 %v590, %v596
    %vm599 = vc.u32 %v597, %v593
    %v600 = vsel %vm599, 1, 0
    %v601 = vadd.s32 %v597, %v593
    %v602 = vadd.s32 %v598, %v600
    %v603 = vadd.s32 %v602, %v592
    %v604 = vadd.s32 %v603, %v594
    %v605 = vand.u32 %v582, 65535
    %v606 = vshrl.u32 %v582, 16
    %v607 = vand.u32 %v577, 65535
    %v608 = vshrl.u32 %v577, 16
    %v609 = vmul.u32 %v605, %v607
    %v610 = vmul.u32 %v605, %v608
    %v611 = vmul.u32 %v606, %v607
    %v612 = vmul.u32 %v606, %v608
    %v613 = vshll.u32 %v610, 16
    %v614 = vshrl.u32 %v610, 16
    %v615 = vshll.u32 %v611, 16
    %v616 = vshrl.u32 %v611, 16
    %vm617 = vc.u32 %v609, %v613
    %v618 = vsel %vm617, 1, 0
    %v619 = vadd.s32 %v609, %v613
    %v620 = vadd.s32 %v612, %v618
    %vm621 = vc.u32 %v619, %v615
    %v622 = vsel %vm621, 1, 0
    %v623 = vadd.s32 %v619, %v615
    %v624 = vadd.s32 %v620, %v622
    %v625 = vadd.s32 %v624, %v614
    %v626 = vadd.s32 %v625, %v616
    %v627 = vmul.u32 %v582, %v573
    %v628 = vadd.s32 %v604, %v623
    %vm629 = vc.u32 %v604, %v623
    %v630 = vadd.s32 %v626, 1
    %v631 = vsel %vm629, %v630, %v626
    %v632 = vadd.s32 %v627, %v631
    %v633 = vadd.s32 %v632, 536870912
    %v634 = vshrl.u32 %v633, 30
    %v635 = vshll.u32 %v634, 30
    %v636 = vsub.s32 %v632, %v635
    %vm637 = vcmp.lt.s32.totalorder %v636, 0
    %v638 = vsub.s32 0, %v636
    %v639 = vsel %vm637, %v638, %v636
    %v640 = vclz %v639
    %v641 = vsub.s32 %v640, 2
    %vm642 = vcmp.gt.s32.totalorder 0, %v641
    %v643 = vsel %vm642, 0, %v641
    %v644 = vsub.s32 32, %v643
    %v645 = vshll.u32 %v636, %v643
    %v646 = vshrl.u32 %v628, %v644
    %v647 = vor.u32 %v645, %v646
    %v648 = vsub.s32 4294967266, %v643
    %v649 = vadd.s32 %v648, 127
    %v650 = vshll.u32 %v649, 23
    %v651 = vor.u32 4788187, %v650
    %v652 = vand.u32 2147483647, %v651
    %v654 = vcvt.s32.f32 %v647
    %v655 = vmul.f32 %v654, %v652
    %v656 = vxor.u32 %v655, 2147483648
    %v657 = vsel %vm536, %v656, %v655
    %v658 = vsub.s32 4, %v634
    %v659 = vsel %vm536, %v658, %v634
    %v660 = vsel %vm535, %v67, %v657
    %v661 = vsel %vm535, 0, %v659
    %v662 = vmul.f32 %v660, %v660
    %v663 = vmul.f32 %v662, -0.001358992
    %v664 = vadd.f32 %v663, 0.041655596
    %v665 = vmul.f32 %v662, %v664
    %v666 = vadd.f32 %v665, -0.4999988
    %v667 = vmul.f32 %v662, %v666
    %v668 = vadd.f32 1.0, %v667
    %v669 = vmul.f32 %v660, %v660
    %v670 = vmul.f32 %v669, -0.00019511016
    %v671 = vadd.f32 %v670, 0.008332121
    %v672 = vmul.f32 %v669, %v671
    %v673 = vadd.f32 %v672, -0.16666654
    %v674 = vmul.f32 %v669, %v673
    %v675 = vadd.f32 %v674, 1.0
    %v676 = vmul.f32 %v675, %v660
    %vm677 = vweird.f32 %v67
    %v678 = vand.u32 %v661, 3
    %vm679 = vcmp.lt.s32.totalorder %v678, 2
    %vm680 = vcmp.eq.s32.totalorder %v678, 0
    %v681 = vxor.u32 %v676, 2147483648
    %v682 = vsel %vm680, %v668, %v681
    %vm683 = vcmp.eq.s32.totalorder %v678, 2
    %v684 = vxor.u32 %v668, 2147483648
    %v685 = vsel %vm683, %v684, %v676
    %v686 = vsel %vm679, %v682, %v685
    %v687 = vsel %vm677, nan, %v686
    %688 = vst [vmem:[#allocation2 + $0x8] sm:$0xff] %v533
    %689 = vst [vmem:[#allocation2 + $0x18] sm:$0xff] %v687
    // Predicated region
    $region10: #{tpu_custom_call.1} parent=1 // pred_check
      _
    $region11: #{tpu_custom_call.1} parent=1 // pred_check_branch
      %691 = sbr.rel (0) target = $region13
    $region12: #{tpu_custom_call.1} parent=1 // pred_region
      %693 = vsyncadd [#allocation3], 0
      %s694 = sshll.u32 [#allocation2], 4
      %s695 = int_to_ptr.vmem [resolvable:$true] %s694
      %s696 = sshll.u32 %s2, 4
      %s697 = int_to_ptr.hbm [resolvable:$true] %s696
      %702 = dma.vmem_to_hbm [thread:$0]  %s695, 512, %s697, [#allocation3], 256, 256, 16
    $region13: #{tpu_custom_call.1} parent=1 // pred_fallthru
      _
    // Predicated region
    $region14: #{tpu_custom_call.1} parent=1 // pred_check
      _
    $region15: #{tpu_custom_call.1} parent=1 // pred_check_branch
      %704 = sbr.rel (0) target = $region17
    $region16: #{tpu_custom_call.1} parent=1 // pred_region
      %706 = dma.done [#allocation3], 512
    $region17: #{tpu_custom_call.1} parent=1 // pred_fallthru
      _
    %707 = vsyncpa [#allocation3], 1

</llo_original>
